<compile_context>
chip_gen: v7x
topology: tpu7x:2x2x1
jax: 0.10.0
libtpu: 0.0.40
codegen_flags: <defaults>
</compile_context>

<pallas_src>
import functools
import math

import jax
import jax.numpy as jnp
from jax.experimental import pallas as pl
from jax.experimental.pallas import tpu as pltpu

# Scoped-VMEM ceiling for all pallas_calls: safely above the v5e 16 MiB default,
# below v7x's 64 MiB physical.
VMEM_LIMIT = 48 * 1024 * 1024
# Target double-buffered working set for the classifier tiles.
K4_VMEM_BUDGET = 24 * 1024 * 1024


def _round_up(x, m):
    return ((x + m - 1) // m) * m


def _largest_divisor(n, candidates):
    for c in candidates:
        if n % c == 0:
            return c
    return n


# --------------------------------------------------------------------------
# Kernel 1: spatial avg-pool + fused f2h/f2c linear
#   x:(tb1, S, C) -> hc:(tb1, 2*Hp)   (channels on lanes; mean is a sublane reduce)
# --------------------------------------------------------------------------
def _init_state_kernel(x_ref, w_ref, b_ref, hc_ref):
    feat = jnp.mean(x_ref[...].astype(jnp.float32), axis=1).astype(jnp.bfloat16)
    hc_ref[...] = (jnp.dot(feat, w_ref[...],
                           preferred_element_type=jnp.float32) + b_ref[...])


# --------------------------------------------------------------------------
# Kernel 2: hoisted LSTM input projection (one big parallel matmul)
#   gates_x = emb @ W_ih + (b_ih + b_hh)     (stored bf16)
# --------------------------------------------------------------------------
def _input_proj_kernel(a_ref, w_ref, b_ref, o_ref):
    o_ref[...] = (jnp.dot(a_ref[...], w_ref[...],
                          preferred_element_type=jnp.float32)
                  + b_ref[...]).astype(o_ref.dtype)


# --------------------------------------------------------------------------
# Kernel 3: the serial recurrence.  grid=(n_b, Lp//U); axis 0 is an independent
# batch split (megacore-parallel on v7x), axis 1 is the time carry.  h/c live in
# local values across the U statically-unrolled steps; scratch is touched once
# per grid step.  Only h @ W_hh + the gate nonlinearities stay in the loop.
# --------------------------------------------------------------------------
def _lstm_kernel(gx_ref, hc0_ref, whh_ref, hseq_ref, h_scr, c_scr):
    Hp = h_scr.shape[-1]
    U = gx_ref.shape[1]

    @pl.when(pl.program_id(1) == 0)
    def _():
        h_scr[...] = hc0_ref[:, :Hp]
        c_scr[...] = hc0_ref[:, Hp:]

    def sig(z):
        # sigmoid(z) == 0.5*(tanh(z/2)+1): one EUP push per gate instead of two.
        return 0.5 * (jnp.tanh(0.5 * z) + 1.0)

    h = h_scr[...]
    c = c_scr[...]
    for u in range(U):                      # static unroll, static indices
        gates = (gx_ref[:, u, :].astype(jnp.float32) +
                 jnp.dot(h.astype(jnp.bfloat16), whh_ref[...],
                         preferred_element_type=jnp.float32))
        # PyTorch LSTMCell gate order i, f, g, o; Hp is a multiple of 128 so
        # every slice below is lane-aligned.
        i_g = sig(gates[:, 0 * Hp:1 * Hp])
        f_g = sig(gates[:, 1 * Hp:2 * Hp])
        g_g = jnp.tanh(gates[:, 2 * Hp:3 * Hp])
        o_g = sig(gates[:, 3 * Hp:4 * Hp])
        c = f_g * c + i_g * g_g
        h = o_g * jnp.tanh(c)
        hseq_ref[:, u, :] = h.astype(hseq_ref.dtype)
    h_scr[...] = h
    c_scr[...] = c


# --------------------------------------------------------------------------
# Kernel 4: hoisted classifier.  Tiled over (rows = Bp*Lp, vocab), both grid
# axes parallel.  The torch write-mask is folded in; fully-masked row tiles
# skip the matmul via a scalar-prefetched flag.  bf16 logits out.
# --------------------------------------------------------------------------
def _classifier_kernel(active_ref, h_ref, w_ref, b_ref, m_ref, o_ref, *, row_axis):
    i = pl.program_id(row_axis)

    @pl.when(active_ref[i] == 0)
    def _():
        o_ref[...] = jnp.zeros_like(o_ref)

    @pl.when(active_ref[i] != 0)
    def _():
        logits = (jnp.dot(h_ref[...], w_ref[...],
                          preferred_element_type=jnp.float32) + b_ref[...])
        # Dropout(p=0.5) == identity at inference; m_ref zeroes rows the torch
        # loop never writes.  TODO(synk): the (tm,1) mask operand could be
        # replaced by an SMEM-scalar + iota mask; kept as-is (negligible traffic).
        o_ref[...] = (logits * m_ref[...]).astype(o_ref.dtype)


# --------------------------------------------------------------------------
# Parameter construction (deterministic, mirrors the torch __init__ shapes)
# --------------------------------------------------------------------------
def make_params(key, feat_size, hidden_size, vocab_size, channel_size):
    ks = jax.random.split(key, 8)

    def xavier(k, shape):  # (out, in) fan convention like nn.Linear
        bound = math.sqrt(6.0 / (shape[0] + shape[1]))
        return jax.random.uniform(k, shape, jnp.float32, -bound, bound)

    H, F, V, C = hidden_size, feat_size, vocab_size, channel_size
    lstm_bound = 1.0 / math.sqrt(H)

    return {
        # nn.Linear(C, H), stored pre-transposed (in, out); bias filled with 0
        "w_f2h": xavier(ks[0], (H, C)).T, "b_f2h": jnp.zeros((1, H), jnp.float32),
        "w_f2c": xavier(ks[1], (H, C)).T, "b_f2c": jnp.zeros((1, H), jnp.float32),
        # nn.LSTMCell(F, H): default torch init U(-1/sqrt(H), 1/sqrt(H))
        "w_ih": jax.random.uniform(ks[2], (F, 4 * H), jnp.float32,
                                   -lstm_bound, lstm_bound),
        "w_hh": jax.random.uniform(ks[3], (H, 4 * H), jnp.float32,
                                   -lstm_bound, lstm_bound),
        # NOTE: stands in for b_ih + b_hh (init-only detail).
        "b_lstm": jax.random.uniform(ks[4], (1, 4 * H), jnp.float32,
                                     -2 * lstm_bound, 2 * lstm_bound),
        # nn.Linear(H, V)
        "w_cls": xavier(ks[5], (V, H)).T, "b_cls": jnp.zeros((1, V), jnp.float32),
        # nn.Embedding(V, F), uniform(-0.1, 0.1)
        "emb": jax.random.uniform(ks[6], (V, F), jnp.float32, -0.1, 0.1),
    }


def _prepare_padded_params(params, Hp, Vp):
    """Zero-pad to lane-aligned sizes (exactness preserved), fuse f2h/f2c into
    a single (C, 2*Hp) weight and cast all matmul weights to bf16 (f32
    accumulation happens inside the kernels)."""
    C, H = params["w_f2h"].shape
    F = params["w_ih"].shape[0]
    G = 4 * Hp

    def pad2(a, rows, cols):
        return jnp.pad(a, ((0, rows - a.shape[0]), (0, cols - a.shape[1])))

    def pad_gates(w, rows_p):
        # (in, 4H) -> (in_p, 4*Hp): pad each gate block separately so the
        # i/f/g/o slices stay at lane-aligned offsets k*Hp.
        w3 = w.reshape(w.shape[0], 4, H)
        w3 = jnp.pad(w3, ((0, rows_p - w.shape[0]), (0, 0), (0, Hp - H)))
        return w3.reshape(rows_p, G)

    w_f2hc = jnp.concatenate([pad2(params["w_f2h"], C, Hp),
                              pad2(params["w_f2c"], C, Hp)], axis=1)   # (C, 2Hp)
    b_f2hc = jnp.concatenate([pad2(params["b_f2h"], 1, Hp),
                              pad2(params["b_f2c"], 1, Hp)], axis=1)   # (1, 2Hp)

    return {
        "w_f2hc": w_f2hc.astype(jnp.bfloat16),
        "b_f2hc": b_f2hc,                                              # f32
        "w_ih":  pad_gates(params["w_ih"], F).astype(jnp.bfloat16),
        "w_hh":  pad_gates(params["w_hh"], Hp).astype(jnp.bfloat16),
        "b_lstm": pad_gates(params["b_lstm"], 1),                      # f32
        "w_cls": pad2(params["w_cls"], Hp, Vp).astype(jnp.bfloat16),
        "b_cls": pad2(params["b_cls"], 1, Vp),                         # f32
        "emb":   params["emb"].astype(jnp.bfloat16),
    }


# --------------------------------------------------------------------------
# Forward wrapper
# --------------------------------------------------------------------------
def vse_cap_forward(params, x, caption, mask, maxlen):
    """`maxlen` is the static Python int max caption length (== max(mask.sum(1)));
    passing it statically avoids the host sync and keeps this jit-compatible."""
    B, C, wh, _ = x.shape
    S = wh * wh
    L = caption.shape[1]
    H = params["w_f2h"].shape[1]
    V = params["w_cls"].shape[1]
    F = params["emb"].shape[1]

    U = 8                                    # timesteps per recurrent grid step
    Bp = _round_up(B, 8)
    Lp = _round_up(L, U)
    Hp = _round_up(H, 128)
    Vp = _round_up(V, 128)
    G = 4 * Hp
    M = Bp * Lp                              # flattened (batch, time) rows

    p = _prepare_padded_params(params, Hp, Vp)

    # ---- (1) avg-pool + fused f2h|f2c -> hc0 -------------------------------
    # Channels go on lanes: (B, C, S) -> (B, S, C); spatial mean is a sublane
    # reduce instead of a padded cross-lane one.  Batch-tiled + parallel grid.
    x_bsc = jnp.pad(
        jnp.transpose(x.reshape(B, C, S), (0, 2, 1)).astype(jnp.bfloat16),
        ((0, Bp - B), (0, 0), (0, 0)))
    tb1 = _largest_divisor(Bp, (32, 16, 8))
    hc0 = pl.pallas_call(
        _init_state_kernel,
        out_shape=jax.ShapeDtypeStruct((Bp, 2 * Hp), jnp.float32),
        grid=(Bp // tb1,),
        in_specs=[
            pl.BlockSpec((tb1, S, C), lambda i: (i, 0, 0)),
            pl.BlockSpec((C, 2 * Hp), lambda i: (0, 0)),
            pl.BlockSpec((1, 2 * Hp), lambda i: (0, 0)),
        ],
        out_specs=pl.BlockSpec((tb1, 2 * Hp), lambda i: (i, 0)),
        compiler_params=pltpu.CompilerParams(
            dimension_semantics=("parallel",),
            vmem_limit_bytes=VMEM_LIMIT),
    )(x_bsc, p["w_f2hc"], p["b_f2hc"])

    # ---- (2) embedding gather (XLA glue) + hoisted input projection --------
    cap_p = jnp.pad(caption, ((0, Bp - B), (0, Lp - L)))           # pad id 0
    emb_flat = jnp.take(p["emb"], cap_p, axis=0).reshape(M, F)     # (M, F) bf16

    tm_ip = _largest_divisor(M, (512, 256, 128, 64, 32, 16, 8))
    tg = _largest_divisor(G, (2048, 1024, 512, 256, 128))
    gates_x = pl.pallas_call(
        _input_proj_kernel,
        out_shape=jax.ShapeDtypeStruct((M, G), jnp.bfloat16),      # bf16 intermediate
        grid=(M // tm_ip, G // tg),
        in_specs=[
            pl.BlockSpec((tm_ip, F), lambda i, j: (i, 0)),
            pl.BlockSpec((F, tg), lambda i, j: (0, j)),
            pl.BlockSpec((1, tg), lambda i, j: (0, j)),
        ],
        out_specs=pl.BlockSpec((tm_ip, tg), lambda i, j: (i, j)),
        compiler_params=pltpu.CompilerParams(
            dimension_semantics=("parallel", "parallel"),
            vmem_limit_bytes=VMEM_LIMIT),
    )(emb_flat, p["w_ih"], p["b_lstm"])
    gates_x = gates_x.reshape(Bp, Lp, G)

    # ---- (3) LSTM recurrence: the only serial kernel ------------------------
    # Leading "parallel" batch-split axis lets v7x's 2 TensorCores each run half
    # the batch (rows are independent); kept at 1 for small batches so block
    # shapes stay sublane-aligned.
    n_b = 2 if (Bp >= 16 and Bp % 16 == 0) else 1
    TB = Bp // n_b
    h_seq = pl.pallas_call(
        _lstm_kernel,
        out_shape=jax.ShapeDtypeStruct((Bp, Lp, Hp), jnp.bfloat16),
        grid=(n_b, Lp // U),
        in_specs=[
            pl.BlockSpec((TB, U, G), lambda b, k: (b, k, 0)),      # gates_x chunk
            pl.BlockSpec((TB, 2 * Hp), lambda b, k: (b, 0)),       # (h0|c0)
            pl.BlockSpec((Hp, G), lambda b, k: (0, 0)),            # W_hh (bf16)
        ],
        out_specs=pl.BlockSpec((TB, U, Hp), lambda b, k: (b, k, 0)),
        scratch_shapes=[pltpu.VMEM((TB, Hp), jnp.float32),         # Lh carry
                        pltpu.VMEM((TB, Hp), jnp.float32)],        # Lc carry
        compiler_params=pltpu.CompilerParams(
            dimension_semantics=("parallel", "arbitrary"),         # time = carry
            vmem_limit_bytes=VMEM_LIMIT),
    )(gates_x, hc0, p["w_hh"])

    # ---- (4) write-mask bookkeeping of the torch loop -----------------------
    # torch writes predictions[:batch_size_t, T, :] only for T < maxlen-1, where
    # batch_size_t = #captions with length > T; exactly reproduced here.
    lengths = jnp.sum(mask, axis=1).astype(jnp.int32)                    # (B,)
    bsz_t = jnp.sum(lengths[None, :] > jnp.arange(Lp)[:, None], axis=1)  # (Lp,)
    write_mask = ((jnp.arange(Bp)[:, None] < bsz_t[None, :]) &
                  (jnp.arange(Lp)[None, :] < (maxlen - 1))
                  ).astype(jnp.float32)                                  # (Bp, Lp)
    mask_flat = write_mask.reshape(M, 1)

    # ---- (5) hoisted, vocab-tiled classifier ---------------------------------
    # Large tiles chosen against an explicit VMEM budget (double-buffered).
    tm = _largest_divisor(M, (512, 256, 128, 64, 32, 16, 8))

    def k4_vmem(tm_, tn_):
        return (2 * (tm_ * Hp * 2 + Hp * tn_ * 2 + tn_ * 4 + tm_ * 4)
                + 2 * tm_ * tn_ * 2)

    tn_cands = [c for c in (2048, 1024, 512, 256, 128) if Vp % c == 0]
    tn = tn_cands[-1]
    for c in tn_cands:
        if k4_vmem(tm, c) <= K4_VMEM_BUDGET:
            tn = c
            break
    while k4_vmem(tm, tn) > K4_VMEM_BUDGET and tm > 8:
        tm //= 2
    n_mt, n_vt = M // tm, Vp // tn

    tile_active = (write_mask.reshape(n_mt, tm).max(axis=1) > 0).astype(jnp.int32)

    # Grid order: keep the operand with the larger total re-stream cost resident
    # (inner axis iterates over the other operand's tiles).
    traffic_rows_outer = n_mt * Hp * Vp * 2 + M * Hp * 2    # W_cls re-streamed
    traffic_rows_inner = n_vt * M * Hp * 2 + Hp * Vp * 2    # h_seq re-streamed
    rows_inner = traffic_rows_inner <= traffic_rows_outer
    if rows_inner:
        grid = (n_vt, n_mt)
        row_axis = 1
        h_map = lambda j, i, act: (i, 0)
        w_map = lambda j, i, act: (0, j)
        b_map = lambda j, i, act: (0, j)
        m_map = lambda j, i, act: (i, 0)
        o_map = lambda j, i, act: (i, j)
    else:
        grid = (n_mt, n_vt)
        row_axis = 0
        h_map = lambda i, j, act: (i, 0)
        w_map = lambda i, j, act: (0, j)
        b_map = lambda i, j, act: (0, j)
        m_map = lambda i, j, act: (i, 0)
        o_map = lambda i, j, act: (i, j)

    logits = pl.pallas_call(
        functools.partial(_classifier_kernel, row_axis=row_axis),
        out_shape=jax.ShapeDtypeStruct((M, Vp), jnp.bfloat16),    # bf16 logits
        grid_spec=pltpu.PrefetchScalarGridSpec(
            num_scalar_prefetch=1,
            grid=grid,
            in_specs=[
                pl.BlockSpec((tm, Hp), h_map),    # h rows (bf16)
                pl.BlockSpec((Hp, tn), w_map),    # W_cls tile (bf16)
                pl.BlockSpec((1, tn), b_map),     # b_cls tile
                pl.BlockSpec((tm, 1), m_map),     # per-row write mask
            ],
            out_specs=pl.BlockSpec((tm, tn), o_map),
        ),
        compiler_params=pltpu.CompilerParams(
            dimension_semantics=("parallel", "parallel"),
            vmem_limit_bytes=VMEM_LIMIT),
    )(tile_active, h_seq.reshape(M, Hp), p["w_cls"], p["b_cls"], mask_flat)

    # predictions has shape (B, max(maxlen), vocab_size) like the torch module;
    # cast back to f32 only on the valid slice (the big (M,Vp) write stays bf16).
    return logits.reshape(Bp, Lp, Vp)[:B, :maxlen, :V].astype(jnp.float32)


# --------------------------------------------------------------------------
if __name__ == "__main__":
    feat_size, hidden_size, vocab_size = 16, 32, 64
    sptial_size, channel_size, out_channel = 16, 8, 8
    wh = int(math.sqrt(sptial_size))
    B, L = 4, 8

    key = jax.random.PRNGKey(0)
    kp, kx, kc = jax.random.split(key, 3)

    params = make_params(kp, feat_size, hidden_size, vocab_size, channel_size)

    # "CNN" feature map (ResNet-101 stub, see TODO above): (B, C, wh, wh)
    x = jax.random.normal(kx, (B, channel_size, wh, wh), jnp.float32)
    caption = jax.random.randint(kc, (B, L), 0, vocab_size, jnp.int32)
    # caption lengths sorted descending, as the reference code assumes
    lengths = [8, 6, 5, 3]
    mask = jnp.stack([jnp.where(jnp.arange(L) < l, 1.0, 0.0) for l in lengths]
                     ).astype(jnp.float32)                      # (B, L)
    maxlen = int(max(lengths))                                  # static int

    preds = vse_cap_forward(params, x, caption, mask, maxlen)
    jax.block_until_ready(preds)
    assert preds.shape == (B, maxlen, vocab_size)
    print("KERNEL_OK")
</pallas_src>

<mosaic_0001>
module attributes {stable_mosaic.version = 11 : i64} {
  func.func @_init_state_kernel(%arg0: i32, %arg1: memref<8x16x8xbf16, #tpu.memory_space<vmem>>, %arg2: memref<8x256xbf16, #tpu.memory_space<vmem>>, %arg3: memref<1x256xf32, #tpu.memory_space<vmem>>, %arg4: memref<8x256xf32, #tpu.memory_space<vmem>>) attributes {dimension_semantics = [#tpu.dimension_semantics<parallel>], iteration_bounds = array<i64: 1>, scalar_prefetch = 0 : i64, scratch_operands = 0 : i64, tpu.core_type = #tpu.core_type<tc>, window_params = [{transform_indices = @transform_0, window_bounds = array<i64: 8, 16, 8>}, {pipeline_mode = #tpu.pipeline_mode<synchronous>, transform_indices = @transform_1, window_bounds = array<i64: 8, 256>}, {pipeline_mode = #tpu.pipeline_mode<synchronous>, transform_indices = @transform_2, window_bounds = array<i64: 1, 256>}, {transform_indices = @transform_3, window_bounds = array<i64: 8, 256>}]} {
    %c0 = arith.constant 0 : index
    %c0_0 = arith.constant 0 : index
    %c0_1 = arith.constant 0 : index
    %0 = vector.load %arg1[%c0, %c0_0, %c0_1] : memref<8x16x8xbf16, #tpu.memory_space<vmem>>, vector<8x16x8xbf16>
    %1 = arith.extf %0 : vector<8x16x8xbf16> to vector<8x16x8xf32>
    %cst = arith.constant dense<0.000000e+00> : vector<8x8xf32>
    %2 = vector.multi_reduction <add>, %1, %cst [1] : vector<8x16x8xf32> to vector<8x8xf32>
    %cst_2 = arith.constant 1.600000e+01 : f32
    %3 = vector.broadcast %cst_2 : f32 to vector<8x8xf32>
    %4 = arith.divf %2, %3 : vector<8x8xf32>
    %5 = arith.truncf %4 : vector<8x8xf32> to vector<8x8xbf16>
    %c0_3 = arith.constant 0 : index
    %c0_4 = arith.constant 0 : index
    %6 = vector.load %arg2[%c0_3, %c0_4] : memref<8x256xbf16, #tpu.memory_space<vmem>>, vector<8x256xbf16>
    %cst_5 = arith.constant dense<0.000000e+00> : vector<8x256xf32>
    %7 = tpu.matmul %5, %6, %cst_5 {dimension_numbers = #tpu.dot_dimension_numbers<[1], [0], [0], [1], [0, 0, 1, 1], [], []>} : vector<8x8xbf16>, vector<8x256xbf16>, vector<8x256xf32> -> vector<8x256xf32>
    %c0_6 = arith.constant 0 : index
    %c0_7 = arith.constant 0 : index
    %8 = vector.load %arg3[%c0_6, %c0_7] : memref<1x256xf32, #tpu.memory_space<vmem>>, vector<1x256xf32>
    %9 = vector.broadcast %8 : vector<1x256xf32> to vector<8x256xf32>
    %10 = arith.addf %7, %9 : vector<8x256xf32>
    %c0_8 = arith.constant 0 : index
    %c0_9 = arith.constant 0 : index
    %11 = vector.load %arg4[%c0_8, %c0_9] : memref<8x256xf32, #tpu.memory_space<vmem>>, vector<8x256xf32>
    tpu.vector_store %arg4[%c0_8, %c0_9], %10 {strides = array<i32>} : memref<8x256xf32, #tpu.memory_space<vmem>>, vector<8x256xf32>,
    return
  }
  func.func @transform_0(%arg0: i32) -> (i32, i32, i32) {
    %c0_i32 = arith.constant 0 : i32
    %c0_i32_0 = arith.constant 0 : i32
    %c0_i32_1 = arith.constant 0 : i32
    return %arg0, %c0_i32, %c0_i32_0 : i32, i32, i32
  }
  func.func @transform_1(%arg0: i32) -> (i32, i32) {
    %c0_i32 = arith.constant 0 : i32
    %c0_i32_0 = arith.constant 0 : i32
    %c0_i32_1 = arith.constant 0 : i32
    return %c0_i32, %c0_i32_0 : i32, i32
  }
  func.func @transform_2(%arg0: i32) -> (i32, i32) {
    %c0_i32 = arith.constant 0 : i32
    %c0_i32_0 = arith.constant 0 : i32
    %c0_i32_1 = arith.constant 0 : i32
    return %c0_i32, %c0_i32_0 : i32, i32
  }
  func.func @transform_3(%arg0: i32) -> (i32, i32) {
    %c0_i32 = arith.constant 0 : i32
    %c0_i32_0 = arith.constant 0 : i32
    return %arg0, %c0_i32 : i32, i32
  }
}

</mosaic_0001>

<llo_original>
// kernel: tpu_custom_call.1
$region0: #{tpu_custom_call.1}
  #allocation0 [shape = 'u32[]', space=smem, size = 0x4, offset = 0x4, fixed_abs, tag = 'smem constant byte address 0x4 - core index']
  #allocation1 [shape = 'u32[144,128]{1,0:T(1,128)}', space=vmem, size = 0x12000, scoped, tag = 'internal scratch']
  %s0 = inlined_call_operand.vmem [shape: bf16[8,16,8], index: 0, kind: input, shape index: {}]
  %s1 = inlined_call_operand.vmem [shape: bf16[8,256], index: 1, kind: input, shape index: {}]
  %s2 = inlined_call_operand.vmem [shape: f32[1,256], index: 2, kind: input, shape index: {}]
  %s3 = inlined_call_operand.hbm [shape: f32[8,256], index: 3, kind: output, shape index: {}]
  %s4 = sld [smem:[#allocation0]]
  $region22: #{tpu_custom_call.1} parent=0
    _
  %s6 = ssub.s32 1, %s4
  %s7 = scalar_select 0, %s6, %s4
  $region1: #{tpu_custom_call.1} parent=0
    #allocation2 [shape = 'u8[8192]{0}', space=vmem, size = 0x2000, scoped, tag = 'output window, operand 0, single buffered']
    #allocation3 [shape = 's32[1]{0}', space=sflag, size = 0x4, scoped, tag = 'scoped memory for tpu_custom_call.1']
    %8 = vsyncpa [#allocation3], 0
    // Predicated region
    $region2: #{tpu_custom_call.1} parent=1 // pred_check
      _
    $region3: #{tpu_custom_call.1} parent=1 // pred_check_branch
      %10 = sbr.rel (0) target = $region5
    $region4: #{tpu_custom_call.1} parent=1 // pred_region
      _
    $region5: #{tpu_custom_call.1} parent=1 // pred_fallthru
      _
    // Predicated region
    $region6: #{tpu_custom_call.1} parent=1 // pred_check
      _
    $region7: #{tpu_custom_call.1} parent=1 // pred_check_branch
      %12 = sbr.rel (0) target = $region9
    $region8: #{tpu_custom_call.1} parent=1 // pred_region
      _
    $region9: #{tpu_custom_call.1} parent=1 // pred_fallthru
      _
    // Predicated region
    $region10: #{tpu_custom_call.1} parent=1 // pred_check
      _
    $region11: #{tpu_custom_call.1} parent=1 // pred_check_branch
      %14 = sbr.rel (0) target = $region13
    $region12: #{tpu_custom_call.1} parent=1 // pred_region
      _
    $region13: #{tpu_custom_call.1} parent=1 // pred_fallthru
      _
    %v16 = vld [vmem:[%s0] sm:$0xf]
    %v17 = vld [vmem:[%s0 + $0x4] sm:$0xf]
    %v18 = vld [vmem:[%s0 + $0x8] sm:$0xf]
    %v19 = vld [vmem:[%s0 + $0xc] sm:$0xf]
    %v20 = vld [vmem:[%s0 + $0x10] sm:$0xf]
    %v21 = vld [vmem:[%s0 + $0x14] sm:$0xf]
    %v22 = vld [vmem:[%s0 + $0x18] sm:$0xf]
    %v23 = vld [vmem:[%s0 + $0x1c] sm:$0xf]
    %v24 = vld [vmem:[%s0 + $0x20] sm:$0xf]
    %v25 = vld [vmem:[%s0 + $0x24] sm:$0xf]
    %v26 = vld [vmem:[%s0 + $0x28] sm:$0xf]
    %v27 = vld [vmem:[%s0 + $0x2c] sm:$0xf]
    %v28 = vld [vmem:[%s0 + $0x30] sm:$0xf]
    %v29 = vld [vmem:[%s0 + $0x34] sm:$0xf]
    %v30 = vld [vmem:[%s0 + $0x38] sm:$0xf]
    %v31 = vld [vmem:[%s0 + $0x3c] sm:$0xf]
    %v32 = vunpack.c.l.bf16 %v16
    %v33 = vunpack.c.l.bf16 %v17
    %v34 = vunpack.c.l.bf16 %v18
    %v35 = vunpack.c.l.bf16 %v19
    %v36 = vunpack.c.l.bf16 %v20
    %v37 = vunpack.c.l.bf16 %v21
    %v38 = vunpack.c.l.bf16 %v22
    %v39 = vunpack.c.l.bf16 %v23
    %v40 = vunpack.c.l.bf16 %v24
    %v41 = vunpack.c.l.bf16 %v25
    %v42 = vunpack.c.l.bf16 %v26
    %v43 = vunpack.c.l.bf16 %v27
    %v44 = vunpack.c.l.bf16 %v28
    %v45 = vunpack.c.l.bf16 %v29
    %v46 = vunpack.c.l.bf16 %v30
    %v47 = vunpack.c.l.bf16 %v31
    %vm48 = vcmask 64512
    %v49 = vsel %vm48, %v32, 0.0
    %v50 = vsel %vm48, %v33, 0.0
    %v51 = vadd.f32 %v49, %v50
    %v52 = vrot.slane %v51, 4
    %v53 = vadd.f32 %v51, %v52
    %v54 = vrot.slane %v53, 2
    %v55 = vadd.f32 %v53, %v54
    %v56 = vrot.slane %v55, 1
    %v57 = vadd.f32 %v55, %v56
    %v58 = vsel %vm48, %v34, 0.0
    %v59 = vsel %vm48, %v35, 0.0
    %v60 = vadd.f32 %v58, %v59
    %v61 = vrot.slane %v60, 4
    %v62 = vadd.f32 %v60, %v61
    %v63 = vrot.slane %v62, 2
    %v64 = vadd.f32 %v62, %v63
    %v65 = vrot.slane %v64, 1
    %v66 = vadd.f32 %v64, %v65
    %v67 = vsel %vm48, %v36, 0.0
    %v68 = vsel %vm48, %v37, 0.0
    %v69 = vadd.f32 %v67, %v68
    %v70 = vrot.slane %v69, 4
    %v71 = vadd.f32 %v69, %v70
    %v72 = vrot.slane %v71, 2
    %v73 = vadd.f32 %v71, %v72
    %v74 = vrot.slane %v73, 1
    %v75 = vadd.f32 %v73, %v74
    %v76 = vsel %vm48, %v38, 0.0
    %v77 = vsel %vm48, %v39, 0.0
    %v78 = vadd.f32 %v76, %v77
    %v79 = vrot.slane %v78, 4
    %v80 = vadd.f32 %v78, %v79
    %v81 = vrot.slane %v80, 2
    %v82 = vadd.f32 %v80, %v81
    %v83 = vrot.slane %v82, 1
    %v84 = vadd.f32 %v82, %v83
    %v85 = vsel %vm48, %v40, 0.0
    %v86 = vsel %vm48, %v41, 0.0
    %v87 = vadd.f32 %v85, %v86
    %v88 = vrot.slane %v87, 4
    %v89 = vadd.f32 %v87, %v88
    %v90 = vrot.slane %v89, 2
    %v91 = vadd.f32 %v89, %v90
    %v92 = vrot.slane %v91, 1
    %v93 = vadd.f32 %v91, %v92
    %v94 = vsel %vm48, %v42, 0.0
    %v95 = vsel %vm48, %v43, 0.0
    %v96 = vadd.f32 %v94, %v95
    %v97 = vrot.slane %v96, 4
    %v98 = vadd.f32 %v96, %v97
    %v99 = vrot.slane %v98, 2
    %v100 = vadd.f32 %v98, %v99
    %v101 = vrot.slane %v100, 1
    %v102 = vadd.f32 %v100, %v101
    %v103 = vsel %vm48, %v44, 0.0
    %v104 = vsel %vm48, %v45, 0.0
    %v105 = vadd.f32 %v103, %v104
    %v106 = vrot.slane %v105, 4
    %v107 = vadd.f32 %v105, %v106
    %v108 = vrot.slane %v107, 2
    %v109 = vadd.f32 %v107, %v108
    %v110 = vrot.slane %v109, 1
    %v111 = vadd.f32 %v109, %v110
    %v112 = vsel %vm48, %v46, 0.0
    %v113 = vsel %vm48, %v47, 0.0
    %v114 = vadd.f32 %v112, %v113
    %v115 = vrot.slane %v114, 4
    %v116 = vadd.f32 %v114, %v115
    %v117 = vrot.slane %v116, 2
    %v118 = vadd.f32 %v116, %v117
    %v119 = vrot.slane %v118, 1
    %v120 = vadd.f32 %v118, %v119
    %v121 = vrcp.pop 16.0
    %v122 = vmul.f32 %v57, %v121
    %v123 = vmul.f32 %v66, %v121
    %v124 = vmul.f32 %v75, %v121
    %v125 = vmul.f32 %v84, %v121
    %v126 = vmul.f32 %v93, %v121
    %v127 = vmul.f32 %v102, %v121
    %v128 = vmul.f32 %v111, %v121
    %v129 = vmul.f32 %v120, %v121
    %v130 = vpack.c.bf16 %v122, %v122
    %v131 = vpack.c.bf16 %v123, %v123
    %v132 = vpack.c.bf16 %v124, %v124
    %v133 = vpack.c.bf16 %v125, %v125
    %v134 = vpack.c.bf16 %v126, %v126
    %v135 = vpack.c.bf16 %v127, %v127
    %v136 = vpack.c.bf16 %v128, %v128
    %v137 = vpack.c.bf16 %v129, %v129
    %v138 = vld [vmem:[%s1] sm:$0xff]
    %v139 = vld [vmem:[%s2] sm:$0x3]
    %v141 = vlaneseq
    %v142 = vshrl.u32 %v141, 7
    %v143 = vsub.s32 0, %v142
    %v144 = vrot.slane %v139, %v143
    %v145 = vlaneseq
    %v146 = vshrl.u32 %v145, 7
    %v147 = vsub.s32 1, %v146
    %v148 = vrot.slane %v139, %v147
    %v159 = vunpack.c.l.b16 %v130
    %v160 = vunpack.c.l.b16 %v131
    %v161 = vunpack.c.l.b16 %v132
    %v162 = vunpack.c.l.b16 %v133
    %v163 = vunpack.c.l.b16 %v134
    %v164 = vunpack.c.l.b16 %v135
    %v165 = vunpack.c.l.b16 %v136
    %v166 = vunpack.c.l.b16 %v137
    %vm167 = vcmask 1041409
    %v168 = vsel %vm167, %v160, %v159
    %vm169 = vcmask 1042434
    %v170 = vsel %vm169, %v161, %v168
    %vm171 = vcmask 1043459
    %v172 = vsel %vm171, %v162, %v170
    %vm173 = vcmask 1044484
    %v174 = vsel %vm173, %v163, %v172
    %vm175 = vcmask 1045509
    %v176 = vsel %vm175, %v164, %v174
    %vm177 = vcmask 1046534
    %v178 = vsel %vm177, %v165, %v176
    %vm179 = vcmask 1047559
    %v180 = vsel %vm179, %v166, %v178
    %v181 = vpack.c.b16 %v180, %v180
    %v183 = vunpack.c.l.b16 %v138
    %v184 = vunpack.c.h.b16 %v138
    %v185 = vpack.c.b16 %v183, %v183
    %v186 = vpack.c.b16 %v184, %v184
    %v188 = vsel %vm48, %v181, 0
    %vm190 = vcmask 1043456
    %v192 = vsel %vm190, %v185, 0
    %v195 = vsel %vm190, %v186, 0
    %197 = vmatprep.subr.bf16.mxu0 %v195
    %198 = vmatpush1.bf16.msra.mxu0 %v192
    %199 = vmatprep.subr.bf16.mxu0 0
    %200 = vmatpush1.bf16.msra.mxu0 0
    %201 = vmatprep.subr.bf16.mxu0 0
    %202 = vmatpush1.bf16.msra.mxu0 0
    %203 = vmatprep.subr.bf16.mxu0 0
    %204 = vmatpush1.bf16.msra.mxu0 0
    %205 = vmatprep.subr.bf16.mxu0 0
    %206 = vmatpush1.bf16.msra.mxu0 0
    %207 = vmatprep.subr.bf16.mxu0 0
    %208 = vmatpush1.bf16.msra.mxu0 0
    %209 = vmatprep.subr.bf16.mxu0 0
    %210 = vmatpush1.bf16.msra.mxu0 0
    %211 = vmatprep.subr.bf16.mxu0 0
    %212 = vmatpush1.bf16.msra.mxu0 0
    %213 = vmatprep.subr.bf16.mxu0 0
    %214 = vmatpush1.bf16.msra.mxu0 0
    %215 = vmatprep.subr.bf16.mxu0 0
    %216 = vmatpush1.bf16.msra.mxu0 0
    %217 = vmatprep.subr.bf16.mxu0 0
    %218 = vmatpush1.bf16.msra.mxu0 0
    %219 = vmatprep.subr.bf16.mxu0 0
    %220 = vmatpush1.bf16.msra.mxu0 0
    %221 = vmatprep.subr.bf16.mxu0 0
    %222 = vmatpush1.bf16.msra.mxu0 0
    %223 = vmatprep.subr.bf16.mxu0 0
    %224 = vmatpush1.bf16.msra.mxu0 0
    %225 = vmatprep.subr.bf16.mxu0 0
    %226 = vmatpush1.bf16.msra.mxu0 0
    %227 = vmatprep.subr.bf16.mxu0 0
    %228 = vmatpush1.bf16.msra.mxu0 0
    %229 = vmatprep.mubr.bf16.mxu0 0
    %230 = vmatmul.mubr.bf16.gmra.mrb[0].mxu0 %v188
    %v231 = vpop.f32.mrb[0].mxu0
    %v232 = vadd.f32 %v144, %v231
    %v233 = vpop.f32.mrb[0].mxu0
    %v234 = vadd.f32 %v148, %v233
    %v235 = vpop.f32.mrb[0].mxu0
    %v236 = vpop.f32.mrb[0].mxu0
    %237 = vdwg.mxu0
    %238 = vst [vmem:[#allocation2] sm:$0xff] %v232
    %239 = vst [vmem:[#allocation2 + $0x8] sm:$0xff] %v234
    // Predicated region
    $region14: #{tpu_custom_call.1} parent=1 // pred_check
      _
    $region15: #{tpu_custom_call.1} parent=1 // pred_check_branch
      %241 = sbr.rel (0) target = $region17
    $region16: #{tpu_custom_call.1} parent=1 // pred_region
      %s243 = ssub.s32 256, 256
      %244 = vsyncadd [#allocation3], %s243
      %s246 = sshll.u32 [#allocation2], 4
      %s247 = int_to_ptr.vmem [resolvable:$true] %s246
      %249 = dma.vmem_to_hbm [thread:$0]  %s247, 256, %s3, [#allocation3]
    $region17: #{tpu_custom_call.1} parent=1 // pred_fallthru
      _
    // Predicated region
    $region18: #{tpu_custom_call.1} parent=1 // pred_check
      _
    $region19: #{tpu_custom_call.1} parent=1 // pred_check_branch
      %251 = sbr.rel (0) target = $region21
    $region20: #{tpu_custom_call.1} parent=1 // pred_region
      %252 = dma.done [#allocation3], 256
    $region21: #{tpu_custom_call.1} parent=1 // pred_fallthru
      _
    %253 = vsyncpa [#allocation3], 1

</llo_original>
